<compile_context>
chip_gen: v6e
topology: v6e:2x2x1
jax: 0.10.0
libtpu: 0.0.40
codegen_flags: <defaults>
</compile_context>

<pallas_src>
import functools

import jax
import jax.numpy as jnp
from jax.experimental import pallas as pl
from jax.experimental.pallas import tpu as pltpu


# ------------------------------ shared FC helper ------------------------------


def _fc_att(mean_col, max_col, w1_ref, b1_ref, w2_ref, b2_ref):
    """fc(mean), fc(max) -> sigmoid(sum). Columns are (C, 1); weights (out, in).

    Tiny matvecs (run once per batch) -- negligible next to the HBM streams.
    """
    def fc(v):                                            # v: (C, 1)
        h = jnp.maximum(
            jnp.dot(w1_ref[...], v, preferred_element_type=jnp.float32)
            + b1_ref[...], 0.0)                           # (Cr, 1)
        return jax.nn.sigmoid(
            jnp.dot(w2_ref[...], h, preferred_element_type=jnp.float32)
            + b2_ref[...])                                # (C, 1), fc ends in Sigmoid
    return jax.nn.sigmoid(fc(mean_col) + fc(max_col))     # (C, 1), second sigmoid


# ------------------------------ Pallas kernels --------------------------------


def _fused_kernel(x_ref, w1_ref, b1_ref, w2_ref, b2_ref, o_ref, *, inv_hw):
    """Small-input fast path: pool + FC + scale on one resident (C, HW) slab."""
    x = x_ref[0].astype(jnp.float32)                      # (C, HW)
    mean = jnp.sum(x, axis=-1, keepdims=True) * inv_hw    # (C, 1)
    mx = jnp.max(x, axis=-1, keepdims=True)               # (C, 1)
    att = _fc_att(mean, mx, w1_ref, b1_ref, w2_ref, b2_ref)
    o_ref[0] = (x * att).astype(o_ref.dtype)              # lane-dense store


def _pool_att_kernel(x_ref, w1_ref, b1_ref, w2_ref, b2_ref, att_ref,
                     sum_ref, max_ref, *, inv_hw, hw, needs_mask):
    """Pass 1: tiled per-channel sum/max over H*W; FC epilogue at the last tile.

    Grid = (B, n_hw); hw axis is the reduction ("arbitrary"). Accumulators live
    in VMEM scratch; att (the (C, 1) attention column) is written once per b.
    """
    h = pl.program_id(1)
    x = x_ref[0].astype(jnp.float32)                      # (C, thw)

    if needs_mask:
        thw = x.shape[-1]
        lane = jax.lax.broadcasted_iota(jnp.int32, x.shape, 1) + h * thw
        valid = lane < hw
        xs = jnp.where(valid, x, 0.0)
        xm = jnp.where(valid, x, -jnp.inf)
    else:
        xs = x
        xm = x

    t_sum = jnp.sum(xs, axis=-1, keepdims=True)           # (C, 1)
    t_max = jnp.max(xm, axis=-1, keepdims=True)           # (C, 1)

    @pl.when(h == 0)
    def _():
        sum_ref[...] = t_sum
        max_ref[...] = t_max

    @pl.when(h > 0)
    def _():
        sum_ref[...] = sum_ref[...] + t_sum
        max_ref[...] = jnp.maximum(max_ref[...], t_max)

    @pl.when(h == pl.num_programs(1) - 1)
    def _():
        att_ref[0] = _fc_att(sum_ref[...] * inv_hw, max_ref[...],
                             w1_ref, b1_ref, w2_ref, b2_ref)


def _scale_kernel(att_ref, x_ref, o_ref):
    """Pass 2: o = x * att, per (batch, hw-tile). att broadcasts along lanes."""
    o_ref[0] = (x_ref[0].astype(jnp.float32) * att_ref[0]).astype(o_ref.dtype)


# --------------------------------- wrapper -------------------------------------


def _pick_hw_tile(hw, c, elem_bytes, tile_budget_bytes):
    """Lane tile: multiple of 128 with (C, thw) tile bytes under budget, or full HW."""
    if hw * c * elem_bytes <= tile_budget_bytes:
        return hw                                   # single full block (always legal)
    t = tile_budget_bytes // (c * elem_bytes)
    t = max(128, (t // 128) * 128)                  # keep the BlockSpec 128-lane legal
    return min(t, hw)


def channel_attention(x_nchw, params, *,
                      tile_budget_bytes=2 * 1024 * 1024,
                      fused_slab_bytes=2 * 1024 * 1024):
    B, C, H, W = x_nchw.shape
    HW = H * W
    x3 = x_nchw.reshape(B, C, HW)                   # free reshape, no transpose
    elem = x_nchw.dtype.itemsize
    w1, b1, w2, b2 = params['w1'], params['b1'], params['w2'], params['b2']
    Cr = w1.shape[0]
    wt_specs = [
        pl.BlockSpec((Cr, C), lambda b, h: (0, 0)),
        pl.BlockSpec((Cr, 1), lambda b, h: (0, 0)),
        pl.BlockSpec((C, Cr), lambda b, h: (0, 0)),
        pl.BlockSpec((C, 1), lambda b, h: (0, 0)),
    ]

    # ---------------- fast path: whole per-batch slab resident in VMEM ----------
    if C * HW * elem <= fused_slab_bytes:
        y3 = pl.pallas_call(
            functools.partial(_fused_kernel, inv_hw=1.0 / HW),
            out_shape=jax.ShapeDtypeStruct((B, C, HW), x3.dtype),
            grid_spec=pltpu.PrefetchScalarGridSpec(
                num_scalar_prefetch=0,
                grid=(B,),
                in_specs=[
                    pl.BlockSpec((1, C, HW), lambda b: (b, 0, 0)),
                    pl.BlockSpec((Cr, C), lambda b: (0, 0)),
                    pl.BlockSpec((Cr, 1), lambda b: (0, 0)),
                    pl.BlockSpec((C, Cr), lambda b: (0, 0)),
                    pl.BlockSpec((C, 1), lambda b: (0, 0)),
                ],
                out_specs=pl.BlockSpec((1, C, HW), lambda b: (b, 0, 0))),
            compiler_params=pltpu.CompilerParams(
                dimension_semantics=("parallel",)),
        )(x3, w1, b1, w2, b2)
        return y3.reshape(B, C, H, W)

    # ---------------- general path: tiled pool+FC, then tiled scale -------------
    thw = _pick_hw_tile(HW, C, elem, tile_budget_bytes)
    n_hw = pl.cdiv(HW, thw)
    needs_mask = (HW % thw) != 0

    att = pl.pallas_call(
        functools.partial(_pool_att_kernel, inv_hw=1.0 / HW, hw=HW,
                          needs_mask=needs_mask),
        out_shape=jax.ShapeDtypeStruct((B, C, 1), jnp.float32),
        grid_spec=pltpu.PrefetchScalarGridSpec(
            num_scalar_prefetch=0,
            grid=(B, n_hw),
            in_specs=[pl.BlockSpec((1, C, thw), lambda b, h: (b, 0, h))] + wt_specs,
            out_specs=pl.BlockSpec((1, C, 1), lambda b, h: (b, 0, 0)),
            scratch_shapes=[pltpu.VMEM((C, 1), jnp.float32),    # running sum
                            pltpu.VMEM((C, 1), jnp.float32)]),  # running max
        compiler_params=pltpu.CompilerParams(
            dimension_semantics=("parallel", "arbitrary")),
    )(x3, w1, b1, w2, b2)

    y3 = pl.pallas_call(
        _scale_kernel,
        out_shape=jax.ShapeDtypeStruct((B, C, HW), x3.dtype),
        grid_spec=pltpu.PrefetchScalarGridSpec(
            num_scalar_prefetch=0,
            grid=(B, n_hw),
            in_specs=[
                pl.BlockSpec((1, C, 1), lambda b, h: (b, 0, 0)),     # att (resident)
                pl.BlockSpec((1, C, thw), lambda b, h: (b, 0, h)),   # x tile
            ],
            out_specs=pl.BlockSpec((1, C, thw), lambda b, h: (b, 0, h))),
        compiler_params=pltpu.CompilerParams(
            dimension_semantics=("parallel", "parallel")),
    )(att, x3)

    return y3.reshape(B, C, H, W)


# ------------------------------- params / reference ----------------------------


def init_params(key, channels, reduction=16):
    cr = max(channels // reduction, 1)
    k1, k2, k3, k4 = jax.random.split(key, 4)
    s1 = (1.0 / channels) ** 0.5
    s2 = (1.0 / cr) ** 0.5
    # Linear weights in PyTorch (out, in) layout; biases as (out, 1) columns.
    return {
        'w1': jax.random.uniform(k1, (cr, channels), jnp.float32, -s1, s1),
        'b1': jax.random.uniform(k2, (cr, 1), jnp.float32, -s1, s1),
        'w2': jax.random.uniform(k3, (channels, cr), jnp.float32, -s2, s2),
        'b2': jax.random.uniform(k4, (channels, 1), jnp.float32, -s2, s2),
    }


def channel_attention_ref(x_nchw, p):
    """Pure-JAX reference matching the PyTorch ChannelAttention.forward."""
    xf = x_nchw.astype(jnp.float32)
    avg = jnp.mean(xf, axis=(2, 3))                       # (B, C)
    mx = jnp.max(xf, axis=(2, 3))                         # (B, C)

    def fc(v):
        h = jnp.maximum(v @ p['w1'].T + p['b1'][:, 0], 0.0)
        return jax.nn.sigmoid(h @ p['w2'].T + p['b2'][:, 0])

    att = jax.nn.sigmoid(fc(avg) + fc(mx))                # (B, C), double sigmoid kept
    return (xf * att[:, :, None, None]).astype(x_nchw.dtype)


# ----------------------------------- main ---------------------------------------

if __name__ == "__main__":
    key = jax.random.PRNGKey(0)
    kp, kx, kx2 = jax.random.split(key, 3)

    # Case 1: default dispatch -> fused fast path (single kernel, 2 HBM streams).
    B, C, H, W = 2, 128, 16, 16
    params = init_params(kp, C, reduction=16)
    x = jax.random.normal(kx, (B, C, H, W), jnp.float32)
    y = jax.jit(channel_attention)(x, params)
    jax.block_until_ready(y)
    y_ref = channel_attention_ref(x, params)
    assert y.shape == x.shape and y.dtype == x.dtype
    assert bool(jnp.all(jnp.isfinite(y)))
    err = float(jnp.max(jnp.abs(y - y_ref)))
    assert err < 1e-4, err

    # Case 2: force the tiled general path (pool+FC pass, then scale pass) with
    # H*W not divisible by the lane tile -> exercises cdiv grid + tail masking.
    B2, C2, H2, W2 = 2, 64, 18, 18                        # HW = 324
    params2 = init_params(kp, C2, reduction=8)
    x2 = jax.random.normal(kx2, (B2, C2, H2, W2), jnp.float32)
    fwd2 = jax.jit(functools.partial(channel_attention,
                                     fused_slab_bytes=0,
                                     tile_budget_bytes=64 * 1024))
    y2 = fwd2(x2, params2)
    jax.block_until_ready(y2)
    y2_ref = channel_attention_ref(x2, params2)
    assert y2.shape == x2.shape and y2.dtype == x2.dtype
    assert bool(jnp.all(jnp.isfinite(y2)))
    err2 = float(jnp.max(jnp.abs(y2 - y2_ref)))
    assert err2 < 1e-4, err2

    print("KERNEL_OK")
</pallas_src>

<mosaic_0001>
module attributes {stable_mosaic.version = 11 : i64} {
  func.func @_fused_kernel(%arg0: i32, %arg1: memref<1x128x256xf32, #tpu.memory_space<vmem>>, %arg2: memref<8x128xf32, #tpu.memory_space<vmem>>, %arg3: memref<8x1xf32, #tpu.memory_space<vmem>>, %arg4: memref<128x8xf32, #tpu.memory_space<vmem>>, %arg5: memref<128x1xf32, #tpu.memory_space<vmem>>, %arg6: memref<1x128x256xf32, #tpu.memory_space<vmem>>) attributes {dimension_semantics = [#tpu.dimension_semantics<parallel>], iteration_bounds = array<i64: 2>, scalar_prefetch = 0 : i64, scratch_operands = 0 : i64, tpu.core_type = #tpu.core_type<tc>, window_params = [{transform_indices = @transform_0, window_bounds = array<i64: 1, 128, 256>}, {pipeline_mode = #tpu.pipeline_mode<synchronous>, transform_indices = @transform_1, window_bounds = array<i64: 8, 128>}, {pipeline_mode = #tpu.pipeline_mode<synchronous>, transform_indices = @transform_2, window_bounds = array<i64: 8, 1>}, {pipeline_mode = #tpu.pipeline_mode<synchronous>, transform_indices = @transform_3, window_bounds = array<i64: 128, 8>}, {pipeline_mode = #tpu.pipeline_mode<synchronous>, transform_indices = @transform_4, window_bounds = array<i64: 128, 1>}, {transform_indices = @transform_5, window_bounds = array<i64: 1, 128, 256>}]} {
    %c0 = arith.constant 0 : index
    %c0_0 = arith.constant 0 : index
    %c0_1 = arith.constant 0 : index
    %0 = vector.load %arg1[%c0, %c0_0, %c0_1] : memref<1x128x256xf32, #tpu.memory_space<vmem>>, vector<1x128x256xf32>
    %1 = vector.shape_cast %0 : vector<1x128x256xf32> to vector<128x256xf32>
    %cst = arith.constant dense<0.000000e+00> : vector<128xf32>
    %2 = vector.multi_reduction <add>, %1, %cst [1] : vector<128x256xf32> to vector<128xf32>
    %3 = vector.shape_cast %2 : vector<128xf32> to vector<128x1xf32>
    %cst_2 = arith.constant 3.906250e-03 : f32
    %4 = vector.broadcast %cst_2 : f32 to vector<128x1xf32>
    %5 = arith.mulf %3, %4 : vector<128x1xf32>
    %cst_3 = arith.constant dense<0xFF800000> : vector<128xf32>
    %6 = vector.multi_reduction <maximumf>, %1, %cst_3 [1] : vector<128x256xf32> to vector<128xf32>
    %7 = vector.shape_cast %6 : vector<128xf32> to vector<128x1xf32>
    %c0_4 = arith.constant 0 : index
    %c0_5 = arith.constant 0 : index
    %8 = vector.load %arg2[%c0_4, %c0_5] : memref<8x128xf32, #tpu.memory_space<vmem>>, vector<8x128xf32>
    %cst_6 = arith.constant dense<0.000000e+00> : vector<8x1xf32>
    %9 = tpu.matmul %8, %5, %cst_6 {dimension_numbers = #tpu.dot_dimension_numbers<[1], [0], [0], [1], [0, 0, 1, 1], [], []>} : vector<8x128xf32>, vector<128x1xf32>, vector<8x1xf32> -> vector<8x1xf32>
    %c0_7 = arith.constant 0 : index
    %c0_8 = arith.constant 0 : index
    %10 = vector.load %arg3[%c0_7, %c0_8] : memref<8x1xf32, #tpu.memory_space<vmem>>, vector<8x1xf32>
    %11 = arith.addf %9, %10 : vector<8x1xf32>
    %cst_9 = arith.constant 0.000000e+00 : f32
    %12 = vector.broadcast %cst_9 : f32 to vector<8x1xf32>
    %13 = arith.maximumf %11, %12 : vector<8x1xf32>
    %c0_10 = arith.constant 0 : index
    %c0_11 = arith.constant 0 : index
    %14 = vector.load %arg4[%c0_10, %c0_11] : memref<128x8xf32, #tpu.memory_space<vmem>>, vector<128x8xf32>
    %cst_12 = arith.constant dense<0.000000e+00> : vector<128x1xf32>
    %15 = tpu.matmul %14, %13, %cst_12 {dimension_numbers = #tpu.dot_dimension_numbers<[1], [0], [0], [1], [0, 0, 1, 1], [], []>} : vector<128x8xf32>, vector<8x1xf32>, vector<128x1xf32> -> vector<128x1xf32>
    %c0_13 = arith.constant 0 : index
    %c0_14 = arith.constant 0 : index
    %16 = vector.load %arg5[%c0_13, %c0_14] : memref<128x1xf32, #tpu.memory_space<vmem>>, vector<128x1xf32>
    %17 = arith.addf %15, %16 : vector<128x1xf32>
    %18 = arith.negf %17 : vector<128x1xf32>
    %19 = math.exp %18 : vector<128x1xf32>
    %cst_15 = arith.constant 1.000000e+00 : f32
    %20 = vector.broadcast %cst_15 : f32 to vector<128x1xf32>
    %21 = arith.addf %20, %19 : vector<128x1xf32>
    %22 = arith.divf %20, %21 : vector<128x1xf32>
    %c0_16 = arith.constant 0 : index
    %c0_17 = arith.constant 0 : index
    %23 = vector.load %arg2[%c0_16, %c0_17] : memref<8x128xf32, #tpu.memory_space<vmem>>, vector<8x128xf32>
    %cst_18 = arith.constant dense<0.000000e+00> : vector<8x1xf32>
    %24 = tpu.matmul %23, %7, %cst_18 {dimension_numbers = #tpu.dot_dimension_numbers<[1], [0], [0], [1], [0, 0, 1, 1], [], []>} : vector<8x128xf32>, vector<128x1xf32>, vector<8x1xf32> -> vector<8x1xf32>
    %c0_19 = arith.constant 0 : index
    %c0_20 = arith.constant 0 : index
    %25 = vector.load %arg3[%c0_19, %c0_20] : memref<8x1xf32, #tpu.memory_space<vmem>>, vector<8x1xf32>
    %26 = arith.addf %24, %25 : vector<8x1xf32>
    %cst_21 = arith.constant 0.000000e+00 : f32
    %27 = vector.broadcast %cst_21 : f32 to vector<8x1xf32>
    %28 = arith.maximumf %26, %27 : vector<8x1xf32>
    %c0_22 = arith.constant 0 : index
    %c0_23 = arith.constant 0 : index
    %29 = vector.load %arg4[%c0_22, %c0_23] : memref<128x8xf32, #tpu.memory_space<vmem>>, vector<128x8xf32>
    %cst_24 = arith.constant dense<0.000000e+00> : vector<128x1xf32>
    %30 = tpu.matmul %29, %28, %cst_24 {dimension_numbers = #tpu.dot_dimension_numbers<[1], [0], [0], [1], [0, 0, 1, 1], [], []>} : vector<128x8xf32>, vector<8x1xf32>, vector<128x1xf32> -> vector<128x1xf32>
    %c0_25 = arith.constant 0 : index
    %c0_26 = arith.constant 0 : index
    %31 = vector.load %arg5[%c0_25, %c0_26] : memref<128x1xf32, #tpu.memory_space<vmem>>, vector<128x1xf32>
    %32 = arith.addf %30, %31 : vector<128x1xf32>
    %33 = arith.negf %32 : vector<128x1xf32>
    %34 = math.exp %33 : vector<128x1xf32>
    %cst_27 = arith.constant 1.000000e+00 : f32
    %35 = vector.broadcast %cst_27 : f32 to vector<128x1xf32>
    %36 = arith.addf %35, %34 : vector<128x1xf32>
    %37 = arith.divf %35, %36 : vector<128x1xf32>
    %38 = arith.addf %22, %37 : vector<128x1xf32>
    %39 = arith.negf %38 : vector<128x1xf32>
    %40 = math.exp %39 : vector<128x1xf32>
    %cst_28 = arith.constant 1.000000e+00 : f32
    %41 = vector.broadcast %cst_28 : f32 to vector<128x1xf32>
    %42 = arith.addf %41, %40 : vector<128x1xf32>
    %43 = arith.divf %41, %42 : vector<128x1xf32>
    %44 = vector.broadcast %43 : vector<128x1xf32> to vector<128x256xf32>
    %45 = arith.mulf %1, %44 : vector<128x256xf32>
    %c0_29 = arith.constant 0 : index
    %c0_30 = arith.constant 0 : index
    %c0_31 = arith.constant 0 : index
    %46 = vector.load %arg6[%c0_29, %c0_30, %c0_31] : memref<1x128x256xf32, #tpu.memory_space<vmem>>, vector<1x128x256xf32>
    %47 = vector.shape_cast %46 : vector<1x128x256xf32> to vector<128x256xf32>
    %48 = vector.shape_cast %45 : vector<128x256xf32> to vector<1x128x256xf32>
    tpu.vector_store %arg6[%c0_29, %c0_30, %c0_31], %48 {strides = array<i32>} : memref<1x128x256xf32, #tpu.memory_space<vmem>>, vector<1x128x256xf32>,
    return
  }
  func.func @transform_0(%arg0: i32) -> (i32, i32, i32) {
    %c0_i32 = arith.constant 0 : i32
    %c0_i32_0 = arith.constant 0 : i32
    %c0_i32_1 = arith.constant 0 : i32
    return %arg0, %c0_i32, %c0_i32_0 : i32, i32, i32
  }
  func.func @transform_1(%arg0: i32) -> (i32, i32) {
    %c0_i32 = arith.constant 0 : i32
    %c0_i32_0 = arith.constant 0 : i32
    %c0_i32_1 = arith.constant 0 : i32
    return %c0_i32, %c0_i32_0 : i32, i32
  }
  func.func @transform_2(%arg0: i32) -> (i32, i32) {
    %c0_i32 = arith.constant 0 : i32
    %c0_i32_0 = arith.constant 0 : i32
    %c0_i32_1 = arith.constant 0 : i32
    return %c0_i32, %c0_i32_0 : i32, i32
  }
  func.func @transform_3(%arg0: i32) -> (i32, i32) {
    %c0_i32 = arith.constant 0 : i32
    %c0_i32_0 = arith.constant 0 : i32
    %c0_i32_1 = arith.constant 0 : i32
    return %c0_i32, %c0_i32_0 : i32, i32
  }
  func.func @transform_4(%arg0: i32) -> (i32, i32) {
    %c0_i32 = arith.constant 0 : i32
    %c0_i32_0 = arith.constant 0 : i32
    %c0_i32_1 = arith.constant 0 : i32
    return %c0_i32, %c0_i32_0 : i32, i32
  }
  func.func @transform_5(%arg0: i32) -> (i32, i32, i32) {
    %c0_i32 = arith.constant 0 : i32
    %c0_i32_0 = arith.constant 0 : i32
    %c0_i32_1 = arith.constant 0 : i32
    return %arg0, %c0_i32, %c0_i32_0 : i32, i32, i32
  }
}

</mosaic_0001>

<llo_original>
// kernel: channel_attention.1
$region0: #{channel_attention.1}
  #allocation0 [shape = 'u32[]', space=smem, size = 0x4, offset = 0x4, fixed_abs, tag = 'smem constant byte address 0x4 - core index']
  #allocation1 [shape = 'u32[144,128]{1,0:T(1,128)}', space=vmem, size = 0x12000, scoped, tag = 'internal scratch']
  %s0 = inlined_call_operand.vmem [shape: f32[2,128,256], index: 0, kind: input, shape index: {}]
  %s1 = inlined_call_operand.vmem [shape: f32[8,128], index: 1, kind: input, shape index: {}]
  %s2 = inlined_call_operand.vmem [shape: f32[8,1], index: 2, kind: input, shape index: {}]
  %s3 = inlined_call_operand.vmem [shape: f32[128,8], index: 3, kind: input, shape index: {}]
  %s4 = inlined_call_operand.vmem [shape: f32[128,1], index: 4, kind: input, shape index: {}]
  %s5 = inlined_call_operand.vmem [shape: f32[2,128,256], index: 5, kind: output, shape index: {}]
  %s6 = sld [smem:[#allocation0]]
  $region53: #{channel_attention.1} parent=0
    _
  %s8 = ssub.s32 1, %s6
  %s9 = scalar_select 0, %s8, %s6
  loop: start=0, step=1, limit=4
  $region2: #{channel_attention.1} parent=0 // loop_pre_header
    _
  $region3: #{channel_attention.1} parent=0 // loop_header
    %s11 = sphi 0, %s15
    %p12 = scmp.ge.s32.totalorder %s11, 4
    %s21 = sphi 0, %s23
    %s24 = sphi 0, %s21
    %s25 = sphi 0, %s24
    %s41 = sphi 0, %s25
    %s45 = sphi 0, %s45
    %s47 = sphi 0, %s45
    %s48 = sphi 0, %s47
    %s62 = sphi 0, %s48
    %s66 = sphi 0, %s66
    %s68 = sphi 0, %s66
    %s69 = sphi 0, %s68
    %s83 = sphi 0, %s69
    %s87 = sphi 0, %s87
    %s89 = sphi 0, %s87
    %s90 = sphi 0, %s89
    %s104 = sphi 0, %s90
    %s108 = sphi 0, %s108
    %s110 = sphi 0, %s108
    %s111 = sphi 0, %s110
    %s125 = sphi 0, %s111
    %s131 = sphi 0, %s133
    %s134 = sphi 0, %s131
    %s135 = sphi 0, %s134
    %s151 = sphi 0, %s135
  $region4: #{channel_attention.1} parent=0 // loop_header_branch
    %14 = sbr.rel (%p12) target = $region8
  $region5: #{channel_attention.1} parent=0 // loop_body
    %s16 = ssub.s32 %s11, 1
    %s17 = ssub.s32 %s11, 2
    %s18 = sadd.s32 %s11, 1
    %s19 = ssub.s32 %s11, %s18
    %p20 = scmp.eq.s32.totalorder %s19, 0
    %s22 = sadd.s32 %s21, 1
    %s23 = scalar_select %p20, %s21, %s22
    %p26 = pneg %p20
    %p27 = scmp.eq.s32.totalorder %s11, 1
    %p28 = por %p26, %p27
    %p29 = scmp.ne.s32.totalorder %s21, %s24
    %p30 = scmp.eq.s32.totalorder %s11, 0
    %p31 = por %p29, %p30
    %p32 = scmp.ne.s32.totalorder %s21, %s24
    %p33 = scmp.eq.s32.totalorder %s16, 1
    %p34 = por %p32, %p33
    %p35 = scmp.ne.s32.totalorder %s24, %s25
    %p36 = scmp.eq.s32.totalorder %s16, 0
    %p37 = por %p35, %p36
    %p38 = scmp.ne.s32.totalorder %s24, %s25
    %p39 = scmp.eq.s32.totalorder %s17, 1
    %p40 = por %p38, %p39
    %p42 = scmp.ne.s32.totalorder %s25, %s41
    %p43 = scmp.eq.s32.totalorder %s17, 0
    %p44 = por %p42, %p43
    %s46 = sadd.s32 %s45, 1
    %p49 = scmp.eq.s32.totalorder %s11, 1
    %p50 = scmp.ne.s32.totalorder %s45, %s47
    %p51 = scmp.eq.s32.totalorder %s11, 0
    %p52 = por %p50, %p51
    %p53 = scmp.ne.s32.totalorder %s45, %s47
    %p54 = scmp.eq.s32.totalorder %s16, 1
    %p55 = por %p53, %p54
    %p56 = scmp.ne.s32.totalorder %s47, %s48
    %p57 = scmp.eq.s32.totalorder %s16, 0
    %p58 = por %p56, %p57
    %p59 = scmp.ne.s32.totalorder %s47, %s48
    %p60 = scmp.eq.s32.totalorder %s17, 1
    %p61 = por %p59, %p60
    %p63 = scmp.ne.s32.totalorder %s48, %s62
    %p64 = scmp.eq.s32.totalorder %s17, 0
    %p65 = por %p63, %p64
    %s67 = sadd.s32 %s66, 1
    %p70 = scmp.eq.s32.totalorder %s11, 1
    %p71 = scmp.ne.s32.totalorder %s66, %s68
    %p72 = scmp.eq.s32.totalorder %s11, 0
    %p73 = por %p71, %p72
    %p74 = scmp.ne.s32.totalorder %s66, %s68
    %p75 = scmp.eq.s32.totalorder %s16, 1
    %p76 = por %p74, %p75
    %p77 = scmp.ne.s32.totalorder %s68, %s69
    %p78 = scmp.eq.s32.totalorder %s16, 0
    %p79 = por %p77, %p78
    %p80 = scmp.ne.s32.totalorder %s68, %s69
    %p81 = scmp.eq.s32.totalorder %s17, 1
    %p82 = por %p80, %p81
    %p84 = scmp.ne.s32.totalorder %s69, %s83
    %p85 = scmp.eq.s32.totalorder %s17, 0
    %p86 = por %p84, %p85
    %s88 = sadd.s32 %s87, 1
    %p91 = scmp.eq.s32.totalorder %s11, 1
    %p92 = scmp.ne.s32.totalorder %s87, %s89
    %p93 = scmp.eq.s32.totalorder %s11, 0
    %p94 = por %p92, %p93
    %p95 = scmp.ne.s32.totalorder %s87, %s89
    %p96 = scmp.eq.s32.totalorder %s16, 1
    %p97 = por %p95, %p96
    %p98 = scmp.ne.s32.totalorder %s89, %s90
    %p99 = scmp.eq.s32.totalorder %s16, 0
    %p100 = por %p98, %p99
    %p101 = scmp.ne.s32.totalorder %s89, %s90
    %p102 = scmp.eq.s32.totalorder %s17, 1
    %p103 = por %p101, %p102
    %p105 = scmp.ne.s32.totalorder %s90, %s104
    %p106 = scmp.eq.s32.totalorder %s17, 0
    %p107 = por %p105, %p106
    %s109 = sadd.s32 %s108, 1
    %p112 = scmp.eq.s32.totalorder %s11, 1
    %p113 = scmp.ne.s32.totalorder %s108, %s110
    %p114 = scmp.eq.s32.totalorder %s11, 0
    %p115 = por %p113, %p114
    %p116 = scmp.ne.s32.totalorder %s108, %s110
    %p117 = scmp.eq.s32.totalorder %s16, 1
    %p118 = por %p116, %p117
    %p119 = scmp.ne.s32.totalorder %s110, %s111
    %p120 = scmp.eq.s32.totalorder %s16, 0
    %p121 = por %p119, %p120
    %p122 = scmp.ne.s32.totalorder %s110, %s111
    %p123 = scmp.eq.s32.totalorder %s17, 1
    %p124 = por %p122, %p123
    %p126 = scmp.ne.s32.totalorder %s111, %s125
    %p127 = scmp.eq.s32.totalorder %s17, 0
    %p128 = por %p126, %p127
    %s129 = ssub.s32 %s11, %s18
    %p130 = scmp.eq.s32.totalorder %s129, 0
    %s132 = sadd.s32 %s131, 1
    %s133 = scalar_select %p130, %s131, %s132
    %p136 = pneg %p130
    %p137 = scmp.eq.s32.totalorder %s11, 1
    %p138 = por %p136, %p137
    %p139 = scmp.ne.s32.totalorder %s131, %s134
    %p140 = scmp.eq.s32.totalorder %s11, 0
    %p141 = por %p139, %p140
    %p142 = scmp.ne.s32.totalorder %s131, %s134
    %p143 = scmp.eq.s32.totalorder %s16, 1
    %p144 = por %p142, %p143
    %p145 = scmp.ne.s32.totalorder %s134, %s135
    %p146 = scmp.eq.s32.totalorder %s16, 0
    %p147 = por %p145, %p146
    %p148 = scmp.ne.s32.totalorder %s134, %s135
    %p149 = scmp.eq.s32.totalorder %s17, 1
    %p150 = por %p148, %p149
    %p152 = scmp.ne.s32.totalorder %s135, %s151
    %p153 = scmp.eq.s32.totalorder %s17, 0
    %p154 = por %p152, %p153
    %p155 = scmp.le.s32.totalorder 1, %s11
    %p156 = scmp.lt.s32.totalorder %s11, 3
    %p157 = pnand %p155, %p156
    %p158 = pneg %p157
    // Predicated region
    $region9: #{channel_attention.1} parent=5 // pred_check
      _
    $region10: #{channel_attention.1} parent=5 // pred_check_branch
      %160 = sbr.rel (%p157) target = $region12
    $region11: #{channel_attention.1} parent=5 // pred_region
      %s161 = ssub.s32 %s11, 1
      // Predicated region
      $region13: #{channel_attention.1} parent=11 // pred_check
        %p162 = pneg %p58
      $region14: #{channel_attention.1} parent=11 // pred_check_branch
        %164 = sbr.rel (%p162) target = $region16
      $region15: #{channel_attention.1} parent=11 // pred_region
        _
      $region16: #{channel_attention.1} parent=11 // pred_fallthru
        _
      // Predicated region
      $region17: #{channel_attention.1} parent=11 // pred_check
        %p165 = pneg %p79
      $region18: #{channel_attention.1} parent=11 // pred_check_branch
        %167 = sbr.rel (%p165) target = $region20
      $region19: #{channel_attention.1} parent=11 // pred_region
        _
      $region20: #{channel_attention.1} parent=11 // pred_fallthru
        _
      // Predicated region
      $region21: #{channel_attention.1} parent=11 // pred_check
        %p168 = pneg %p100
      $region22: #{channel_attention.1} parent=11 // pred_check_branch
        %170 = sbr.rel (%p168) target = $region24
      $region23: #{channel_attention.1} parent=11 // pred_region
        _
      $region24: #{channel_attention.1} parent=11 // pred_fallthru
        _
      // Predicated region
      $region25: #{channel_attention.1} parent=11 // pred_check
        %p171 = pneg %p121
      $region26: #{channel_attention.1} parent=11 // pred_check_branch
        %173 = sbr.rel (%p171) target = $region28
      $region27: #{channel_attention.1} parent=11 // pred_region
        _
      $region28: #{channel_attention.1} parent=11 // pred_fallthru
        _
    $region12: #{channel_attention.1} parent=5 // pred_fallthru
      _
    %p174 = scmp.lt.s32.totalorder %s11, 2
    // Predicated region
    $region29: #{channel_attention.1} parent=5 // pred_check
      %p175 = pneg %p174
    $region30: #{channel_attention.1} parent=5 // pred_check_branch
      %177 = sbr.rel (%p175) target = $region32
    $region31: #{channel_attention.1} parent=5 // pred_region
      // Predicated region
      $region33: #{channel_attention.1} parent=31 // pred_check
        %p178 = pneg %p31
      $region34: #{channel_attention.1} parent=31 // pred_check_branch
        %180 = sbr.rel (%p178) target = $region36
      $region35: #{channel_attention.1} parent=31 // pred_region
        %p181 = scmp.lt.s32.totalorder %s11, 1
        %s182 = scalar_select %p181, %s11, 1
        %s183 = smul.addr %s182, 32
        %s184 = smul.addr %s183, 8
        %s185 = scalar_lea.vmem %s0, %s184
      $region36: #{channel_attention.1} parent=31 // pred_fallthru
        _
    $region32: #{channel_attention.1} parent=5 // pred_fallthru
      _
    %p186 = scmp.le.s32.totalorder 1, %s11
    %p187 = scmp.lt.s32.totalorder %s11, 3
    %p188 = pnand %p186, %p187
    %p189 = pneg %p188
    // Predicated region
    $region37: #{channel_attention.1} parent=5 // pred_check
      _
    $region38: #{channel_attention.1} parent=5 // pred_check_branch
      %191 = sbr.rel (%p188) target = $region40
    $region39: #{channel_attention.1} parent=5 // pred_region
      %s192 = ssub.s32 %s11, 1
      %p193 = scmp.lt.s32.totalorder %s16, 1
      %s194 = scalar_select %p193, %s16, 1
      %s195 = smul.addr %s194, 32
      %s196 = smul.addr %s195, 8
      %s197 = scalar_lea.vmem %s0, %s196
      %p198 = pneg %p37
      %p199 = pneg %p34
      %p200 = pneg %p58
      %p201 = pneg %p55
      %p202 = pneg %p79
      %p203 = pneg %p76
      %p204 = pneg %p100
      %p205 = pneg %p97
      %p206 = pneg %p121
      %p207 = pneg %p118
      %p208 = pneg %p147
      %p209 = pneg %p144
      %p210 = scmp.lt.s32.totalorder %s16, 1
      %s211 = scalar_select %p210, %s16, 1
      %s212 = smul.addr %s211, 32
      %s213 = smul.addr %s212, 8
      %s214 = scalar_lea.vmem %s5, %s213
      %p215 = scmp.lt.s32.totalorder %s16, 1
      %s216 = scalar_select %p215, %s16, 1
      %s217 = smul.addr %s216, 32
      %s218 = smul.addr %s217, 8
      %s219 = scalar_lea.vmem %s0, %s218
      %p220 = scmp.lt.s32.totalorder %s16, 1
      %s221 = scalar_select %p220, %s16, 1
      %s222 = smul.addr %s221, 32
      %s223 = smul.addr %s222, 8
      %s224 = scalar_lea.vmem %s5, %s223
      %v225 = vld [vmem:[%s219] sm:$0xff]
      %v226 = vld [vmem:[%s219 + $0x8] sm:$0xff]
      %v227 = vld [vmem:[%s219 + $0x10] sm:$0xff]
      %v228 = vld [vmem:[%s219 + $0x18] sm:$0xff]
      %v229 = vld [vmem:[%s219 + $0x20] sm:$0xff]
      %v230 = vld [vmem:[%s219 + $0x28] sm:$0xff]
      %v231 = vld [vmem:[%s219 + $0x30] sm:$0xff]
      %v232 = vld [vmem:[%s219 + $0x38] sm:$0xff]
      %v233 = vld [vmem:[%s219 + $0x40] sm:$0xff]
      %v234 = vld [vmem:[%s219 + $0x48] sm:$0xff]
      %v235 = vld [vmem:[%s219 + $0x50] sm:$0xff]
      %v236 = vld [vmem:[%s219 + $0x58] sm:$0xff]
      %v237 = vld [vmem:[%s219 + $0x60] sm:$0xff]
      %v238 = vld [vmem:[%s219 + $0x68] sm:$0xff]
      %v239 = vld [vmem:[%s219 + $0x70] sm:$0xff]
      %v240 = vld [vmem:[%s219 + $0x78] sm:$0xff]
      %v241 = vld [vmem:[%s219 + $0x80] sm:$0xff]
      %v242 = vld [vmem:[%s219 + $0x88] sm:$0xff]
      %v243 = vld [vmem:[%s219 + $0x90] sm:$0xff]
      %v244 = vld [vmem:[%s219 + $0x98] sm:$0xff]
      %v245 = vld [vmem:[%s219 + $0xa0] sm:$0xff]
      %v246 = vld [vmem:[%s219 + $0xa8] sm:$0xff]
      %v247 = vld [vmem:[%s219 + $0xb0] sm:$0xff]
      %v248 = vld [vmem:[%s219 + $0xb8] sm:$0xff]
      %v249 = vld [vmem:[%s219 + $0xc0] sm:$0xff]
      %v250 = vld [vmem:[%s219 + $0xc8] sm:$0xff]
      %v251 = vld [vmem:[%s219 + $0xd0] sm:$0xff]
      %v252 = vld [vmem:[%s219 + $0xd8] sm:$0xff]
      %v253 = vld [vmem:[%s219 + $0xe0] sm:$0xff]
      %v254 = vld [vmem:[%s219 + $0xe8] sm:$0xff]
      %v255 = vld [vmem:[%s219 + $0xf0] sm:$0xff]
      %v256 = vld [vmem:[%s219 + $0xf8] sm:$0xff]
      %v257 = vadd.f32 %v225, %v226
      %258 = vadd.xlane.f32.xlu0 %v257
      %v259 = vpop.xlane.xlu0 %258
      %v260 = vadd.f32 %v227, %v228
      %261 = vadd.xlane.f32.xlu0 %v260
      %v262 = vpop.xlane.xlu0 %261
      %v263 = vadd.f32 %v229, %v230
      %264 = vadd.xlane.f32.xlu0 %v263
      %v265 = vpop.xlane.xlu0 %264
      %v266 = vadd.f32 %v231, %v232
      %267 = vadd.xlane.f32.xlu0 %v266
      %v268 = vpop.xlane.xlu0 %267
      %v269 = vadd.f32 %v233, %v234
      %270 = vadd.xlane.f32.xlu0 %v269
      %v271 = vpop.xlane.xlu0 %270
      %v272 = vadd.f32 %v235, %v236
      %273 = vadd.xlane.f32.xlu0 %v272
      %v274 = vpop.xlane.xlu0 %273
      %v275 = vadd.f32 %v237, %v238
      %276 = vadd.xlane.f32.xlu0 %v275
      %v277 = vpop.xlane.xlu0 %276
      %v278 = vadd.f32 %v239, %v240
      %279 = vadd.xlane.f32.xlu0 %v278
      %v280 = vpop.xlane.xlu0 %279
      %v281 = vadd.f32 %v241, %v242
      %282 = vadd.xlane.f32.xlu0 %v281
      %v283 = vpop.xlane.xlu0 %282
      %v284 = vadd.f32 %v243, %v244
      %285 = vadd.xlane.f32.xlu0 %v284
      %v286 = vpop.xlane.xlu0 %285
      %v287 = vadd.f32 %v245, %v246
      %288 = vadd.xlane.f32.xlu0 %v287
      %v289 = vpop.xlane.xlu0 %288
      %v290 = vadd.f32 %v247, %v248
      %291 = vadd.xlane.f32.xlu0 %v290
      %v292 = vpop.xlane.xlu0 %291
      %v293 = vadd.f32 %v249, %v250
      %294 = vadd.xlane.f32.xlu0 %v293
      %v295 = vpop.xlane.xlu0 %294
      %v296 = vadd.f32 %v251, %v252
      %297 = vadd.xlane.f32.xlu0 %v296
      %v298 = vpop.xlane.xlu0 %297
      %v299 = vadd.f32 %v253, %v254
      %300 = vadd.xlane.f32.xlu0 %v299
      %v301 = vpop.xlane.xlu0 %300
      %v302 = vadd.f32 %v255, %v256
      %303 = vadd.xlane.f32.xlu0 %v302
      %v304 = vpop.xlane.xlu0 %303
      %v305 = vmul.f32 %v259, 0.00390625
      %v306 = vmul.f32 %v262, 0.00390625
      %v307 = vmul.f32 %v265, 0.00390625
      %v308 = vmul.f32 %v268, 0.00390625
      %v309 = vmul.f32 %v271, 0.00390625
      %v310 = vmul.f32 %v274, 0.00390625
      %v311 = vmul.f32 %v277, 0.00390625
      %v312 = vmul.f32 %v280, 0.00390625
      %v313 = vmul.f32 %v283, 0.00390625
      %v314 = vmul.f32 %v286, 0.00390625
      %v315 = vmul.f32 %v289, 0.00390625
      %v316 = vmul.f32 %v292, 0.00390625
      %v317 = vmul.f32 %v295, 0.00390625
      %v318 = vmul.f32 %v298, 0.00390625
      %v319 = vmul.f32 %v301, 0.00390625
      %v320 = vmul.f32 %v304, 0.00390625
      %v321 = vmax.f32 %v225, %v226
      %322 = vmax.xlane.f32.xlu0 %v321
      %v323 = vpop.xlane.xlu0 %322
      %v324 = vmax.f32 %v227, %v228
      %325 = vmax.xlane.f32.xlu0 %v324
      %v326 = vpop.xlane.xlu0 %325
      %v327 = vmax.f32 %v229, %v230
      %328 = vmax.xlane.f32.xlu0 %v327
      %v329 = vpop.xlane.xlu0 %328
      %v330 = vmax.f32 %v231, %v232
      %331 = vmax.xlane.f32.xlu0 %v330
      %v332 = vpop.xlane.xlu0 %331
      %v333 = vmax.f32 %v233, %v234
      %334 = vmax.xlane.f32.xlu0 %v333
      %v335 = vpop.xlane.xlu0 %334
      %v336 = vmax.f32 %v235, %v236
      %337 = vmax.xlane.f32.xlu0 %v336
      %v338 = vpop.xlane.xlu0 %337
      %v339 = vmax.f32 %v237, %v238
      %340 = vmax.xlane.f32.xlu0 %v339
      %v341 = vpop.xlane.xlu0 %340
      %v342 = vmax.f32 %v239, %v240
      %343 = vmax.xlane.f32.xlu0 %v342
      %v344 = vpop.xlane.xlu0 %343
      %v345 = vmax.f32 %v241, %v242
      %346 = vmax.xlane.f32.xlu0 %v345
      %v347 = vpop.xlane.xlu0 %346
      %v348 = vmax.f32 %v243, %v244
      %349 = vmax.xlane.f32.xlu0 %v348
      %v350 = vpop.xlane.xlu0 %349
      %v351 = vmax.f32 %v245, %v246
      %352 = vmax.xlane.f32.xlu0 %v351
      %v353 = vpop.xlane.xlu0 %352
      %v354 = vmax.f32 %v247, %v248
      %355 = vmax.xlane.f32.xlu0 %v354
      %v356 = vpop.xlane.xlu0 %355
      %v357 = vmax.f32 %v249, %v250
      %358 = vmax.xlane.f32.xlu0 %v357
      %v359 = vpop.xlane.xlu0 %358
      %v360 = vmax.f32 %v251, %v252
      %361 = vmax.xlane.f32.xlu0 %v360
      %v362 = vpop.xlane.xlu0 %361
      %v363 = vmax.f32 %v253, %v254
      %364 = vmax.xlane.f32.xlu0 %v363
      %v365 = vpop.xlane.xlu0 %364
      %v366 = vmax.f32 %v255, %v256
      %367 = vmax.xlane.f32.xlu0 %v366
      %v368 = vpop.xlane.xlu0 %367
      %v369 = vld [vmem:[%s1] sm:$0xff]
      %v370 = vld [vmem:[%s2] sm:$0xff]
      %371 = vmatprep.subr.mxu0 0.0
      %372 = vmatpush1.msra.mxu0 %v320
      %373 = vmatprep.subr.mxu0 0.0
      %374 = vmatpush1.msra.mxu0 %v319
      %375 = vmatprep.subr.mxu0 0.0
      %376 = vmatpush1.msra.mxu0 %v318
      %377 = vmatprep.subr.mxu0 0.0
      %378 = vmatpush1.msra.mxu0 %v317
      %379 = vmatprep.subr.mxu0 0.0
      %380 = vmatpush1.msra.mxu0 %v316
      %381 = vmatprep.subr.mxu0 0.0
      %382 = vmatpush1.msra.mxu0 %v315
      %383 = vmatprep.subr.mxu0 0.0
      %384 = vmatpush1.msra.mxu0 %v314
      %385 = vmatprep.subr.mxu0 0.0
      %386 = vmatpush1.msra.mxu0 %v313
      %387 = vmatprep.subr.mxu0 0.0
      %388 = vmatpush1.msra.mxu0 %v312
      %389 = vmatprep.subr.mxu0 0.0
      %390 = vmatpush1.msra.mxu0 %v311
      %391 = vmatprep.subr.mxu0 0.0
      %392 = vmatpush1.msra.mxu0 %v310
      %393 = vmatprep.subr.mxu0 0.0
      %394 = vmatpush1.msra.mxu0 %v309
      %395 = vmatprep.subr.mxu0 0.0
      %396 = vmatpush1.msra.mxu0 %v308
      %397 = vmatprep.subr.mxu0 0.0
      %398 = vmatpush1.msra.mxu0 %v307
      %399 = vmatprep.subr.mxu0 0.0
      %400 = vmatpush1.msra.mxu0 %v306
      %401 = vmatprep.subr.mxu0 0.0
      %402 = vmatpush1.msra.mxu0 %v305
      %403 = vmatprep.subr.mxu0 0.0
      %404 = vmatpush2.msra.mxu0 0.0
      %405 = vmatprep.subr.mxu0 0.0
      %406 = vmatpush2.msra.mxu0 0.0
      %407 = vmatprep.subr.mxu0 0.0
      %408 = vmatpush2.msra.mxu0 0.0
      %409 = vmatprep.subr.mxu0 0.0
      %410 = vmatpush2.msra.mxu0 0.0
      %411 = vmatprep.subr.mxu0 0.0
      %412 = vmatpush2.msra.mxu0 0.0
      %413 = vmatprep.subr.mxu0 0.0
      %414 = vmatpush2.msra.mxu0 0.0
      %415 = vmatprep.subr.mxu0 0.0
      %416 = vmatpush2.msra.mxu0 0.0
      %417 = vmatprep.subr.mxu0 0.0
      %418 = vmatpush2.msra.mxu0 0.0
      %419 = vmatprep.subr.mxu0 0.0
      %420 = vmatpush2.msra.mxu0 0.0
      %421 = vmatprep.subr.mxu0 0.0
      %422 = vmatpush2.msra.mxu0 0.0
      %423 = vmatprep.subr.mxu0 0.0
      %424 = vmatpush2.msra.mxu0 0.0
      %425 = vmatprep.subr.mxu0 0.0
      %426 = vmatpush2.msra.mxu0 0.0
      %427 = vmatprep.subr.mxu0 0.0
      %428 = vmatpush2.msra.mxu0 0.0
      %429 = vmatprep.subr.mxu0 0.0
      %430 = vmatpush2.msra.mxu0 0.0
      %431 = vmatprep.subr.mxu0 0.0
      %432 = vmatpush2.msra.mxu0 0.0
      %433 = vmatprep.subr.mxu0 0.0
      %434 = vmatpush2.msra.mxu0 0.0
      %435 = vmatprep.mubr.f32.mxu0 0.0
      %436 = vmatmul.mubr.f32.gmra.mxu0 %v369
      %v437 = vpop.f32.mrf.mxu0
      %v438 = vadd.f32 %v370, %v437
      %v439 = vpop.f32.mrf.mxu0
      %440 = vdwg.mxu0
      %v441 = vmax.f32 %v438, 0.0
      %v442 = vld [vmem:[%s3] sm:$0xff]
      %v443 = vld [vmem:[%s3 + $0x8] sm:$0xff]
      %v444 = vld [vmem:[%s3 + $0x10] sm:$0xff]
      %v445 = vld [vmem:[%s3 + $0x18] sm:$0xff]
      %v446 = vld [vmem:[%s3 + $0x20] sm:$0xff]
      %v447 = vld [vmem:[%s3 + $0x28] sm:$0xff]
      %v448 = vld [vmem:[%s3 + $0x30] sm:$0xff]
      %v449 = vld [vmem:[%s3 + $0x38] sm:$0xff]
      %v450 = vld [vmem:[%s3 + $0x40] sm:$0xff]
      %v451 = vld [vmem:[%s3 + $0x48] sm:$0xff]
      %v452 = vld [vmem:[%s3 + $0x50] sm:$0xff]
      %v453 = vld [vmem:[%s3 + $0x58] sm:$0xff]
      %v454 = vld [vmem:[%s3 + $0x60] sm:$0xff]
      %v455 = vld [vmem:[%s3 + $0x68] sm:$0xff]
      %v456 = vld [vmem:[%s3 + $0x70] sm:$0xff]
      %v457 = vld [vmem:[%s3 + $0x78] sm:$0xff]
      %v458 = vld [vmem:[%s4] sm:$0xff]
      %v459 = vld [vmem:[%s4 + $0x8] sm:$0xff]
      %v460 = vld [vmem:[%s4 + $0x10] sm:$0xff]
      %v461 = vld [vmem:[%s4 + $0x18] sm:$0xff]
      %v462 = vld [vmem:[%s4 + $0x20] sm:$0xff]
      %v463 = vld [vmem:[%s4 + $0x28] sm:$0xff]
      %v464 = vld [vmem:[%s4 + $0x30] sm:$0xff]
      %v465 = vld [vmem:[%s4 + $0x38] sm:$0xff]
      %v466 = vld [vmem:[%s4 + $0x40] sm:$0xff]
      %v467 = vld [vmem:[%s4 + $0x48] sm:$0xff]
      %v468 = vld [vmem:[%s4 + $0x50] sm:$0xff]
      %v469 = vld [vmem:[%s4 + $0x58] sm:$0xff]
      %v470 = vld [vmem:[%s4 + $0x60] sm:$0xff]
      %v471 = vld [vmem:[%s4 + $0x68] sm:$0xff]
      %v472 = vld [vmem:[%s4 + $0x70] sm:$0xff]
      %v473 = vld [vmem:[%s4 + $0x78] sm:$0xff]
      %vm474 = vcmask 64512
      %v476 = vsel %vm474, %v442, 0
      %v479 = vsel %vm474, %v443, 0
      %v482 = vsel %vm474, %v444, 0
      %v485 = vsel %vm474, %v445, 0
      %v488 = vsel %vm474, %v446, 0
      %v491 = vsel %vm474, %v447, 0
      %v494 = vsel %vm474, %v448, 0
      %v497 = vsel %vm474, %v449, 0
      %v500 = vsel %vm474, %v450, 0
      %v503 = vsel %vm474, %v451, 0
      %v506 = vsel %vm474, %v452, 0
      %v509 = vsel %vm474, %v453, 0
      %v512 = vsel %vm474, %v454, 0
      %v515 = vsel %vm474, %v455, 0
      %v518 = vsel %vm474, %v456, 0
      %v521 = vsel %vm474, %v457, 0
      %523 = vmatprep.subr.mxu0 0.0
      %524 = vmatpush1.msra.mxu0 0.0
      %525 = vmatprep.subr.mxu0 0.0
      %526 = vmatpush1.msra.mxu0 0.0
      %527 = vmatprep.subr.mxu0 0.0
      %528 = vmatpush1.msra.mxu0 0.0
      %529 = vmatprep.subr.mxu0 0.0
      %530 = vmatpush1.msra.mxu0 0.0
      %531 = vmatprep.subr.mxu0 0.0
      %532 = vmatpush1.msra.mxu0 0.0
      %533 = vmatprep.subr.mxu0 0.0
      %534 = vmatpush1.msra.mxu0 0.0
      %535 = vmatprep.subr.mxu0 0.0
      %536 = vmatpush1.msra.mxu0 0.0
      %537 = vmatprep.subr.mxu0 0.0
      %538 = vmatpush1.msra.mxu0 0.0
      %539 = vmatprep.subr.mxu0 0.0
      %540 = vmatpush1.msra.mxu0 0.0
      %541 = vmatprep.subr.mxu0 0.0
      %542 = vmatpush1.msra.mxu0 0.0
      %543 = vmatprep.subr.mxu0 0.0
      %544 = vmatpush1.msra.mxu0 0.0
      %545 = vmatprep.subr.mxu0 0.0
      %546 = vmatpush1.msra.mxu0 0.0
      %547 = vmatprep.subr.mxu0 0.0
      %548 = vmatpush1.msra.mxu0 0.0
      %549 = vmatprep.subr.mxu0 0.0
      %550 = vmatpush1.msra.mxu0 0.0
      %551 = vmatprep.subr.mxu0 0.0
      %552 = vmatpush1.msra.mxu0 0.0
      %553 = vmatprep.subr.mxu0 0.0
      %554 = vmatpush1.msra.mxu0 %v441
      %555 = vmatprep.subr.mxu0 0.0
      %556 = vmatpush2.msra.mxu0 0.0
      %557 = vmatprep.subr.mxu0 0.0
      %558 = vmatpush2.msra.mxu0 0.0
      %559 = vmatprep.subr.mxu0 0.0
      %560 = vmatpush2.msra.mxu0 0.0
      %561 = vmatprep.subr.mxu0 0.0
      %562 = vmatpush2.msra.mxu0 0.0
      %563 = vmatprep.subr.mxu0 0.0
      %564 = vmatpush2.msra.mxu0 0.0
      %565 = vmatprep.subr.mxu0 0.0
      %566 = vmatpush2.msra.mxu0 0.0
      %567 = vmatprep.subr.mxu0 0.0
      %568 = vmatpush2.msra.mxu0 0.0
      %569 = vmatprep.subr.mxu0 0.0
      %570 = vmatpush2.msra.mxu0 0.0
      %571 = vmatprep.subr.mxu0 0.0
      %572 = vmatpush2.msra.mxu0 0.0
      %573 = vmatprep.subr.mxu0 0.0
      %574 = vmatpush2.msra.mxu0 0.0
      %575 = vmatprep.subr.mxu0 0.0
      %576 = vmatpush2.msra.mxu0 0.0
      %577 = vmatprep.subr.mxu0 0.0
      %578 = vmatpush2.msra.mxu0 0.0
      %579 = vmatprep.subr.mxu0 0.0
      %580 = vmatpush2.msra.mxu0 0.0
      %581 = vmatprep.subr.mxu0 0.0
      %582 = vmatpush2.msra.mxu0 0.0
      %583 = vmatprep.subr.mxu0 0.0
      %584 = vmatpush2.msra.mxu0 0.0
      %585 = vmatprep.subr.mxu0 0.0
      %586 = vmatpush2.msra.mxu0 0.0
      %587 = vmatprep.mubr.f32.mxu0 0.0
      %588 = vmatmul.mubr.f32.gmra.mxu0 %v476
      %v589 = vpop.f32.mrf.mxu0
      %v590 = vadd.f32 %v458, %v589
      %v591 = vpop.f32.mrf.mxu0
      %592 = vmatprep.mubr.f32.mxu0 0.0
      %593 = vmatmul.mubr.f32.gmra.mxu0 %v479
      %v594 = vpop.f32.mrf.mxu0
      %v595 = vadd.f32 %v459, %v594
      %v596 = vpop.f32.mrf.mxu0
      %597 = vmatprep.mubr.f32.mxu0 0.0
      %598 = vmatmul.mubr.f32.gmra.mxu0 %v482
      %v599 = vpop.f32.mrf.mxu0
      %v600 = vadd.f32 %v460, %v599
      %v601 = vpop.f32.mrf.mxu0
      %602 = vmatprep.mubr.f32.mxu0 0.0
      %603 = vmatmul.mubr.f32.gmra.mxu0 %v485
      %v604 = vpop.f32.mrf.mxu0
      %v605 = vadd.f32 %v461, %v604
      %v606 = vpop.f32.mrf.mxu0
      %607 = vmatprep.mubr.f32.mxu0 0.0
      %608 = vmatmul.mubr.f32.gmra.mxu0 %v488
      %v609 = vpop.f32.mrf.mxu0
      %v610 = vadd.f32 %v462, %v609
      %v611 = vpop.f32.mrf.mxu0
      %612 = vmatprep.mubr.f32.mxu0 0.0
      %613 = vmatmul.mubr.f32.gmra.mxu0 %v491
      %v614 = vpop.f32.mrf.mxu0
      %v615 = vadd.f32 %v463, %v614
      %v616 = vpop.f32.mrf.mxu0
      %617 = vmatprep.mubr.f32.mxu0 0.0
      %618 = vmatmul.mubr.f32.gmra.mxu0 %v494
      %v619 = vpop.f32.mrf.mxu0
      %v620 = vadd.f32 %v464, %v619
      %v621 = vpop.f32.mrf.mxu0
      %622 = vmatprep.mubr.f32.mxu0 0.0
      %623 = vmatmul.mubr.f32.gmra.mxu0 %v497
      %v624 = vpop.f32.mrf.mxu0
      %v625 = vadd.f32 %v465, %v624
      %v626 = vpop.f32.mrf.mxu0
      %627 = vmatprep.mubr.f32.mxu0 0.0
      %628 = vmatmul.mubr.f32.gmra.mxu0 %v500
      %v629 = vpop.f32.mrf.mxu0
      %v630 = vadd.f32 %v466, %v629
      %v631 = vpop.f32.mrf.mxu0
      %632 = vmatprep.mubr.f32.mxu0 0.0
      %633 = vmatmul.mubr.f32.gmra.mxu0 %v503
      %v634 = vpop.f32.mrf.mxu0
      %v635 = vadd.f32 %v467, %v634
      %v636 = vpop.f32.mrf.mxu0
      %637 = vmatprep.mubr.f32.mxu0 0.0
      %638 = vmatmul.mubr.f32.gmra.mxu0 %v506
      %v639 = vpop.f32.mrf.mxu0
      %v640 = vadd.f32 %v468, %v639
      %v641 = vpop.f32.mrf.mxu0
      %642 = vmatprep.mubr.f32.mxu0 0.0
      %643 = vmatmul.mubr.f32.gmra.mxu0 %v509
      %v644 = vpop.f32.mrf.mxu0
      %v645 = vadd.f32 %v469, %v644
      %v646 = vpop.f32.mrf.mxu0
      %647 = vmatprep.mubr.f32.mxu0 0.0
      %648 = vmatmul.mubr.f32.gmra.mxu0 %v512
      %v649 = vpop.f32.mrf.mxu0
      %v650 = vadd.f32 %v470, %v649
      %v651 = vpop.f32.mrf.mxu0
      %652 = vmatprep.mubr.f32.mxu0 0.0
      %653 = vmatmul.mubr.f32.gmra.mxu0 %v515
      %v654 = vpop.f32.mrf.mxu0
      %v655 = vadd.f32 %v471, %v654
      %v656 = vpop.f32.mrf.mxu0
      %657 = vmatprep.mubr.f32.mxu0 0.0
      %658 = vmatmul.mubr.f32.gmra.mxu0 %v518
      %v659 = vpop.f32.mrf.mxu0
      %v660 = vadd.f32 %v472, %v659
      %v661 = vpop.f32.mrf.mxu0
      %662 = vmatprep.mubr.f32.mxu0 0.0
      %663 = vmatmul.mubr.f32.gmra.mxu0 %v521
      %v664 = vpop.f32.mrf.mxu0
      %v665 = vadd.f32 %v473, %v664
      %v666 = vpop.f32.mrf.mxu0
      %667 = vdwg.mxu0
      %v668 = vxor.u32 %v590, 2147483648
      %v669 = vxor.u32 %v595, 2147483648
      %v670 = vxor.u32 %v600, 2147483648
      %v671 = vxor.u32 %v605, 2147483648
      %v672 = vxor.u32 %v610, 2147483648
      %v673 = vxor.u32 %v615, 2147483648
      %v674 = vxor.u32 %v620, 2147483648
      %v675 = vxor.u32 %v625, 2147483648
      %v676 = vxor.u32 %v630, 2147483648
      %v677 = vxor.u32 %v635, 2147483648
      %v678 = vxor.u32 %v640, 2147483648
      %v679 = vxor.u32 %v645, 2147483648
      %v680 = vxor.u32 %v650, 2147483648
      %v681 = vxor.u32 %v655, 2147483648
      %v682 = vxor.u32 %v660, 2147483648
      %v683 = vxor.u32 %v665, 2147483648
      %v684 = vmul.f32 %v668, 1.442695
      %v685 = vpow.pop %v684
      %v686 = vmul.f32 %v669, 1.442695
      %v687 = vpow.pop %v686
      %v688 = vmul.f32 %v670, 1.442695
      %v689 = vpow.pop %v688
      %v690 = vmul.f32 %v671, 1.442695
      %v691 = vpow.pop %v690
      %v692 = vmul.f32 %v672, 1.442695
      %v693 = vpow.pop %v692
      %v694 = vmul.f32 %v673, 1.442695
      %v695 = vpow.pop %v694
      %v696 = vmul.f32 %v674, 1.442695
      %v697 = vpow.pop %v696
      %v698 = vmul.f32 %v675, 1.442695
      %v699 = vpow.pop %v698
      %v700 = vmul.f32 %v676, 1.442695
      %v701 = vpow.pop %v700
      %v702 = vmul.f32 %v677, 1.442695
      %v703 = vpow.pop %v702
      %v704 = vmul.f32 %v678, 1.442695
      %v705 = vpow.pop %v704
      %v706 = vmul.f32 %v679, 1.442695
      %v707 = vpow.pop %v706
      %v708 = vmul.f32 %v680, 1.442695
      %v709 = vpow.pop %v708
      %v710 = vmul.f32 %v681, 1.442695
      %v711 = vpow.pop %v710
      %v712 = vmul.f32 %v682, 1.442695
      %v713 = vpow.pop %v712
      %v714 = vmul.f32 %v683, 1.442695
      %v715 = vpow.pop %v714
      %v716 = vadd.f32 %v685, 1.0
      %v717 = vadd.f32 %v687, 1.0
      %v718 = vadd.f32 %v689, 1.0
      %v719 = vadd.f32 %v691, 1.0
      %v720 = vadd.f32 %v693, 1.0
      %v721 = vadd.f32 %v695, 1.0
      %v722 = vadd.f32 %v697, 1.0
      %v723 = vadd.f32 %v699, 1.0
      %v724 = vadd.f32 %v701, 1.0
      %v725 = vadd.f32 %v703, 1.0
      %v726 = vadd.f32 %v705, 1.0
      %v727 = vadd.f32 %v707, 1.0
      %v728 = vadd.f32 %v709, 1.0
      %v729 = vadd.f32 %v711, 1.0
      %v730 = vadd.f32 %v713, 1.0
      %v731 = vadd.f32 %v715, 1.0
      %v732 = vrcp.pop %v716
      %v733 = vmul.f32 1.0, %v732
      %v734 = vrcp.pop %v717
      %v735 = vmul.f32 1.0, %v734
      %v736 = vrcp.pop %v718
      %v737 = vmul.f32 1.0, %v736
      %v738 = vrcp.pop %v719
      %v739 = vmul.f32 1.0, %v738
      %v740 = vrcp.pop %v720
      %v741 = vmul.f32 1.0, %v740
      %v742 = vrcp.pop %v721
      %v743 = vmul.f32 1.0, %v742
      %v744 = vrcp.pop %v722
      %v745 = vmul.f32 1.0, %v744
      %v746 = vrcp.pop %v723
      %v747 = vmul.f32 1.0, %v746
      %v748 = vrcp.pop %v724
      %v749 = vmul.f32 1.0, %v748
      %v750 = vrcp.pop %v725
      %v751 = vmul.f32 1.0, %v750
      %v752 = vrcp.pop %v726
      %v753 = vmul.f32 1.0, %v752
      %v754 = vrcp.pop %v727
      %v755 = vmul.f32 1.0, %v754
      %v756 = vrcp.pop %v728
      %v757 = vmul.f32 1.0, %v756
      %v758 = vrcp.pop %v729
      %v759 = vmul.f32 1.0, %v758
      %v760 = vrcp.pop %v730
      %v761 = vmul.f32 1.0, %v760
      %v762 = vrcp.pop %v731
      %v763 = vmul.f32 1.0, %v762
      %764 = vmatprep.subr.mxu0 0.0
      %765 = vmatpush1.msra.mxu0 %v368
      %766 = vmatprep.subr.mxu0 0.0
      %767 = vmatpush1.msra.mxu0 %v365
      %768 = vmatprep.subr.mxu0 0.0
      %769 = vmatpush1.msra.mxu0 %v362
      %770 = vmatprep.subr.mxu0 0.0
      %771 = vmatpush1.msra.mxu0 %v359
      %772 = vmatprep.subr.mxu0 0.0
      %773 = vmatpush1.msra.mxu0 %v356
      %774 = vmatprep.subr.mxu0 0.0
      %775 = vmatpush1.msra.mxu0 %v353
      %776 = vmatprep.subr.mxu0 0.0
      %777 = vmatpush1.msra.mxu0 %v350
      %778 = vmatprep.subr.mxu0 0.0
      %779 = vmatpush1.msra.mxu0 %v347
      %780 = vmatprep.subr.mxu0 0.0
      %781 = vmatpush1.msra.mxu0 %v344
      %782 = vmatprep.subr.mxu0 0.0
      %783 = vmatpush1.msra.mxu0 %v341
      %784 = vmatprep.subr.mxu0 0.0
      %785 = vmatpush1.msra.mxu0 %v338
      %786 = vmatprep.subr.mxu0 0.0
      %787 = vmatpush1.msra.mxu0 %v335
      %788 = vmatprep.subr.mxu0 0.0
      %789 = vmatpush1.msra.mxu0 %v332
      %790 = vmatprep.subr.mxu0 0.0
      %791 = vmatpush1.msra.mxu0 %v329
      %792 = vmatprep.subr.mxu0 0.0
      %793 = vmatpush1.msra.mxu0 %v326
      %794 = vmatprep.subr.mxu0 0.0
      %795 = vmatpush1.msra.mxu0 %v323
      %796 = vmatprep.subr.mxu0 0.0
      %797 = vmatpush2.msra.mxu0 0.0
      %798 = vmatprep.subr.mxu0 0.0
      %799 = vmatpush2.msra.mxu0 0.0
      %800 = vmatprep.subr.mxu0 0.0
      %801 = vmatpush2.msra.mxu0 0.0
      %802 = vmatprep.subr.mxu0 0.0
      %803 = vmatpush2.msra.mxu0 0.0
      %804 = vmatprep.subr.mxu0 0.0
      %805 = vmatpush2.msra.mxu0 0.0
      %806 = vmatprep.subr.mxu0 0.0
      %807 = vmatpush2.msra.mxu0 0.0
      %808 = vmatprep.subr.mxu0 0.0
      %809 = vmatpush2.msra.mxu0 0.0
      %810 = vmatprep.subr.mxu0 0.0
      %811 = vmatpush2.msra.mxu0 0.0
      %812 = vmatprep.subr.mxu0 0.0
      %813 = vmatpush2.msra.mxu0 0.0
      %814 = vmatprep.subr.mxu0 0.0
      %815 = vmatpush2.msra.mxu0 0.0
      %816 = vmatprep.subr.mxu0 0.0
      %817 = vmatpush2.msra.mxu0 0.0
      %818 = vmatprep.subr.mxu0 0.0
      %819 = vmatpush2.msra.mxu0 0.0
      %820 = vmatprep.subr.mxu0 0.0
      %821 = vmatpush2.msra.mxu0 0.0
      %822 = vmatprep.subr.mxu0 0.0
      %823 = vmatpush2.msra.mxu0 0.0
      %824 = vmatprep.subr.mxu0 0.0
      %825 = vmatpush2.msra.mxu0 0.0
      %826 = vmatprep.subr.mxu0 0.0
      %827 = vmatpush2.msra.mxu0 0.0
      %828 = vmatprep.mubr.f32.mxu0 0.0
      %829 = vmatmul.mubr.f32.gmra.mxu0 %v369
      %v830 = vpop.f32.mrf.mxu0
      %v831 = vadd.f32 %v370, %v830
      %v832 = vpop.f32.mrf.mxu0
      %833 = vdwg.mxu0
      %v834 = vmax.f32 %v831, 0.0
      %835 = vmatprep.subr.mxu0 0.0
      %836 = vmatpush1.msra.mxu0 0.0
      %837 = vmatprep.subr.mxu0 0.0
      %838 = vmatpush1.msra.mxu0 0.0
      %839 = vmatprep.subr.mxu0 0.0
      %840 = vmatpush1.msra.mxu0 0.0
      %841 = vmatprep.subr.mxu0 0.0
      %842 = vmatpush1.msra.mxu0 0.0
      %843 = vmatprep.subr.mxu0 0.0
      %844 = vmatpush1.msra.mxu0 0.0
      %845 = vmatprep.subr.mxu0 0.0
      %846 = vmatpush1.msra.mxu0 0.0
      %847 = vmatprep.subr.mxu0 0.0
      %848 = vmatpush1.msra.mxu0 0.0
      %849 = vmatprep.subr.mxu0 0.0
      %850 = vmatpush1.msra.mxu0 0.0
      %851 = vmatprep.subr.mxu0 0.0
      %852 = vmatpush1.msra.mxu0 0.0
      %853 = vmatprep.subr.mxu0 0.0
      %854 = vmatpush1.msra.mxu0 0.0
      %855 = vmatprep.subr.mxu0 0.0
      %856 = vmatpush1.msra.mxu0 0.0
      %857 = vmatprep.subr.mxu0 0.0
      %858 = vmatpush1.msra.mxu0 0.0
      %859 = vmatprep.subr.mxu0 0.0
      %860 = vmatpush1.msra.mxu0 0.0
      %861 = vmatprep.subr.mxu0 0.0
      %862 = vmatpush1.msra.mxu0 0.0
      %863 = vmatprep.subr.mxu0 0.0
      %864 = vmatpush1.msra.mxu0 0.0
      %865 = vmatprep.subr.mxu0 0.0
      %866 = vmatpush1.msra.mxu0 %v834
      %867 = vmatprep.subr.mxu0 0.0
      %868 = vmatpush2.msra.mxu0 0.0
      %869 = vmatprep.subr.mxu0 0.0
      %870 = vmatpush2.msra.mxu0 0.0
      %871 = vmatprep.subr.mxu0 0.0
      %872 = vmatpush2.msra.mxu0 0.0
      %873 = vmatprep.subr.mxu0 0.0
      %874 = vmatpush2.msra.mxu0 0.0
      %875 = vmatprep.subr.mxu0 0.0
      %876 = vmatpush2.msra.mxu0 0.0
      %877 = vmatprep.subr.mxu0 0.0
      %878 = vmatpush2.msra.mxu0 0.0
      %879 = vmatprep.subr.mxu0 0.0
      %880 = vmatpush2.msra.mxu0 0.0
      %881 = vmatprep.subr.mxu0 0.0
      %882 = vmatpush2.msra.mxu0 0.0
      %883 = vmatprep.subr.mxu0 0.0
      %884 = vmatpush2.msra.mxu0 0.0
      %885 = vmatprep.subr.mxu0 0.0
      %886 = vmatpush2.msra.mxu0 0.0
      %887 = vmatprep.subr.mxu0 0.0
      %888 = vmatpush2.msra.mxu0 0.0
      %889 = vmatprep.subr.mxu0 0.0
      %890 = vmatpush2.msra.mxu0 0.0
      %891 = vmatprep.subr.mxu0 0.0
      %892 = vmatpush2.msra.mxu0 0.0
      %893 = vmatprep.subr.mxu0 0.0
      %894 = vmatpush2.msra.mxu0 0.0
      %895 = vmatprep.subr.mxu0 0.0
      %896 = vmatpush2.msra.mxu0 0.0
      %897 = vmatprep.subr.mxu0 0.0
      %898 = vmatpush2.msra.mxu0 0.0
      %899 = vmatprep.mubr.f32.mxu0 0.0
      %900 = vmatmul.mubr.f32.gmra.mxu0 %v476
      %v901 = vpop.f32.mrf.mxu0
      %v902 = vadd.f32 %v458, %v901
      %v903 = vpop.f32.mrf.mxu0
      %904 = vmatprep.mubr.f32.mxu0 0.0
      %905 = vmatmul.mubr.f32.gmra.mxu0 %v479
      %v906 = vpop.f32.mrf.mxu0
      %v907 = vadd.f32 %v459, %v906
      %v908 = vpop.f32.mrf.mxu0
      %909 = vmatprep.mubr.f32.mxu0 0.0
      %910 = vmatmul.mubr.f32.gmra.mxu0 %v482
      %v911 = vpop.f32.mrf.mxu0
      %v912 = vadd.f32 %v460, %v911
      %v913 = vpop.f32.mrf.mxu0
      %914 = vmatprep.mubr.f32.mxu0 0.0
      %915 = vmatmul.mubr.f32.gmra.mxu0 %v485
      %v916 = vpop.f32.mrf.mxu0
      %v917 = vadd.f32 %v461, %v916
      %v918 = vpop.f32.mrf.mxu0
      %919 = vmatprep.mubr.f32.mxu0 0.0
      %920 = vmatmul.mubr.f32.gmra.mxu0 %v488
      %v921 = vpop.f32.mrf.mxu0
      %v922 = vadd.f32 %v462, %v921
      %v923 = vpop.f32.mrf.mxu0
      %924 = vmatprep.mubr.f32.mxu0 0.0
      %925 = vmatmul.mubr.f32.gmra.mxu0 %v491
      %v926 = vpop.f32.mrf.mxu0
      %v927 = vadd.f32 %v463, %v926
      %v928 = vpop.f32.mrf.mxu0
      %929 = vmatprep.mubr.f32.mxu0 0.0
      %930 = vmatmul.mubr.f32.gmra.mxu0 %v494
      %v931 = vpop.f32.mrf.mxu0
      %v932 = vadd.f32 %v464, %v931
      %v933 = vpop.f32.mrf.mxu0
      %934 = vmatprep.mubr.f32.mxu0 0.0
      %935 = vmatmul.mubr.f32.gmra.mxu0 %v497
      %v936 = vpop.f32.mrf.mxu0
      %v937 = vadd.f32 %v465, %v936
      %v938 = vpop.f32.mrf.mxu0
      %939 = vmatprep.mubr.f32.mxu0 0.0
      %940 = vmatmul.mubr.f32.gmra.mxu0 %v500
      %v941 = vpop.f32.mrf.mxu0
      %v942 = vadd.f32 %v466, %v941
      %v943 = vpop.f32.mrf.mxu0
      %944 = vmatprep.mubr.f32.mxu0 0.0
      %945 = vmatmul.mubr.f32.gmra.mxu0 %v503
      %v946 = vpop.f32.mrf.mxu0
      %v947 = vadd.f32 %v467, %v946
      %v948 = vpop.f32.mrf.mxu0
      %949 = vmatprep.mubr.f32.mxu0 0.0
      %950 = vmatmul.mubr.f32.gmra.mxu0 %v506
      %v951 = vpop.f32.mrf.mxu0
      %v952 = vadd.f32 %v468, %v951
      %v953 = vpop.f32.mrf.mxu0
      %954 = vmatprep.mubr.f32.mxu0 0.0
      %955 = vmatmul.mubr.f32.gmra.mxu0 %v509
      %v956 = vpop.f32.mrf.mxu0
      %v957 = vadd.f32 %v469, %v956
      %v958 = vpop.f32.mrf.mxu0
      %959 = vmatprep.mubr.f32.mxu0 0.0
      %960 = vmatmul.mubr.f32.gmra.mxu0 %v512
      %v961 = vpop.f32.mrf.mxu0
      %v962 = vadd.f32 %v470, %v961
      %v963 = vpop.f32.mrf.mxu0
      %964 = vmatprep.mubr.f32.mxu0 0.0
      %965 = vmatmul.mubr.f32.gmra.mxu0 %v515
      %v966 = vpop.f32.mrf.mxu0
      %v967 = vadd.f32 %v471, %v966
      %v968 = vpop.f32.mrf.mxu0
      %969 = vmatprep.mubr.f32.mxu0 0.0
      %970 = vmatmul.mubr.f32.gmra.mxu0 %v518
      %v971 = vpop.f32.mrf.mxu0
      %v972 = vadd.f32 %v472, %v971
      %v973 = vpop.f32.mrf.mxu0
      %974 = vmatprep.mubr.f32.mxu0 0.0
      %975 = vmatmul.mubr.f32.gmra.mxu0 %v521
      %v976 = vpop.f32.mrf.mxu0
      %v977 = vadd.f32 %v473, %v976
      %v978 = vpop.f32.mrf.mxu0
      %979 = vdwg.mxu0
      %v980 = vxor.u32 %v902, 2147483648
      %v981 = vxor.u32 %v907, 2147483648
      %v982 = vxor.u32 %v912, 2147483648
      %v983 = vxor.u32 %v917, 2147483648
      %v984 = vxor.u32 %v922, 2147483648
      %v985 = vxor.u32 %v927, 2147483648
      %v986 = vxor.u32 %v932, 2147483648
      %v987 = vxor.u32 %v937, 2147483648
      %v988 = vxor.u32 %v942, 2147483648
      %v989 = vxor.u32 %v947, 2147483648
      %v990 = vxor.u32 %v952, 2147483648
      %v991 = vxor.u32 %v957, 2147483648
      %v992 = vxor.u32 %v962, 2147483648
      %v993 = vxor.u32 %v967, 2147483648
      %v994 = vxor.u32 %v972, 2147483648
      %v995 = vxor.u32 %v977, 2147483648
      %v996 = vmul.f32 %v980, 1.442695
      %v997 = vpow.pop %v996
      %v998 = vmul.f32 %v981, 1.442695
      %v999 = vpow.pop %v998
      %v1000 = vmul.f32 %v982, 1.442695
      %v1001 = vpow.pop %v1000
      %v1002 = vmul.f32 %v983, 1.442695
      %v1003 = vpow.pop %v1002
      %v1004 = vmul.f32 %v984, 1.442695
      %v1005 = vpow.pop %v1004
      %v1006 = vmul.f32 %v985, 1.442695
      %v1007 = vpow.pop %v1006
      %v1008 = vmul.f32 %v986, 1.442695
      %v1009 = vpow.pop %v1008
      %v1010 = vmul.f32 %v987, 1.442695
      %v1011 = vpow.pop %v1010
      %v1012 = vmul.f32 %v988, 1.442695
      %v1013 = vpow.pop %v1012
      %v1014 = vmul.f32 %v989, 1.442695
      %v1015 = vpow.pop %v1014
      %v1016 = vmul.f32 %v990, 1.442695
      %v1017 = vpow.pop %v1016
      %v1018 = vmul.f32 %v991, 1.442695
      %v1019 = vpow.pop %v1018
      %v1020 = vmul.f32 %v992, 1.442695
      %v1021 = vpow.pop %v1020
      %v1022 = vmul.f32 %v993, 1.442695
      %v1023 = vpow.pop %v1022
      %v1024 = vmul.f32 %v994, 1.442695
      %v1025 = vpow.pop %v1024
      %v1026 = vmul.f32 %v995, 1.442695
      %v1027 = vpow.pop %v1026
      %v1028 = vadd.f32 %v997, 1.0
      %v1029 = vadd.f32 %v999, 1.0
      %v1030 = vadd.f32 %v1001, 1.0
      %v1031 = vadd.f32 %v1003, 1.0
      %v1032 = vadd.f32 %v1005, 1.0
      %v1033 = vadd.f32 %v1007, 1.0
      %v1034 = vadd.f32 %v1009, 1.0
      %v1035 = vadd.f32 %v1011, 1.0
      %v1036 = vadd.f32 %v1013, 1.0
      %v1037 = vadd.f32 %v1015, 1.0
      %v1038 = vadd.f32 %v1017, 1.0
      %v1039 = vadd.f32 %v1019, 1.0
      %v1040 = vadd.f32 %v1021, 1.0
      %v1041 = vadd.f32 %v1023, 1.0
      %v1042 = vadd.f32 %v1025, 1.0
      %v1043 = vadd.f32 %v1027, 1.0
      %v1044 = vrcp.pop %v1028
      %v1045 = vmul.f32 1.0, %v1044
      %v1046 = vrcp.pop %v1029
      %v1047 = vmul.f32 1.0, %v1046
      %v1048 = vrcp.pop %v1030
      %v1049 = vmul.f32 1.0, %v1048
      %v1050 = vrcp.pop %v1031
      %v1051 = vmul.f32 1.0, %v1050
      %v1052 = vrcp.pop %v1032
      %v1053 = vmul.f32 1.0, %v1052
      %v1054 = vrcp.pop %v1033
      %v1055 = vmul.f32 1.0, %v1054
      %v1056 = vrcp.pop %v1034
      %v1057 = vmul.f32 1.0, %v1056
      %v1058 = vrcp.pop %v1035
      %v1059 = vmul.f32 1.0, %v1058
      %v1060 = vrcp.pop %v1036
      %v1061 = vmul.f32 1.0, %v1060
      %v1062 = vrcp.pop %v1037
      %v1063 = vmul.f32 1.0, %v1062
      %v1064 = vrcp.pop %v1038
      %v1065 = vmul.f32 1.0, %v1064
      %v1066 = vrcp.pop %v1039
      %v1067 = vmul.f32 1.0, %v1066
      %v1068 = vrcp.pop %v1040
      %v1069 = vmul.f32 1.0, %v1068
      %v1070 = vrcp.pop %v1041
      %v1071 = vmul.f32 1.0, %v1070
      %v1072 = vrcp.pop %v1042
      %v1073 = vmul.f32 1.0, %v1072
      %v1074 = vrcp.pop %v1043
      %v1075 = vmul.f32 1.0, %v1074
      %v1076 = vadd.f32 %v733, %v1045
      %v1077 = vadd.f32 %v735, %v1047
      %v1078 = vadd.f32 %v737, %v1049
      %v1079 = vadd.f32 %v739, %v1051
      %v1080 = vadd.f32 %v741, %v1053
      %v1081 = vadd.f32 %v743, %v1055
      %v1082 = vadd.f32 %v745, %v1057
      %v1083 = vadd.f32 %v747, %v1059
      %v1084 = vadd.f32 %v749, %v1061
      %v1085 = vadd.f32 %v751, %v1063
      %v1086 = vadd.f32 %v753, %v1065
      %v1087 = vadd.f32 %v755, %v1067
      %v1088 = vadd.f32 %v757, %v1069
      %v1089 = vadd.f32 %v759, %v1071
      %v1090 = vadd.f32 %v761, %v1073
      %v1091 = vadd.f32 %v763, %v1075
      %v1092 = vxor.u32 %v1076, 2147483648
      %v1093 = vxor.u32 %v1077, 2147483648
      %v1094 = vxor.u32 %v1078, 2147483648
      %v1095 = vxor.u32 %v1079, 2147483648
      %v1096 = vxor.u32 %v1080, 2147483648
      %v1097 = vxor.u32 %v1081, 2147483648
      %v1098 = vxor.u32 %v1082, 2147483648
      %v1099 = vxor.u32 %v1083, 2147483648
      %v1100 = vxor.u32 %v1084, 2147483648
      %v1101 = vxor.u32 %v1085, 2147483648
      %v1102 = vxor.u32 %v1086, 2147483648
      %v1103 = vxor.u32 %v1087, 2147483648
      %v1104 = vxor.u32 %v1088, 2147483648
      %v1105 = vxor.u32 %v1089, 2147483648
      %v1106 = vxor.u32 %v1090, 2147483648
      %v1107 = vxor.u32 %v1091, 2147483648
      %v1108 = vmul.f32 %v1092, 1.442695
      %v1109 = vpow.pop %v1108
      %v1110 = vmul.f32 %v1093, 1.442695
      %v1111 = vpow.pop %v1110
      %v1112 = vmul.f32 %v1094, 1.442695
      %v1113 = vpow.pop %v1112
      %v1114 = vmul.f32 %v1095, 1.442695
      %v1115 = vpow.pop %v1114
      %v1116 = vmul.f32 %v1096, 1.442695
      %v1117 = vpow.pop %v1116
      %v1118 = vmul.f32 %v1097, 1.442695
      %v1119 = vpow.pop %v1118
      %v1120 = vmul.f32 %v1098, 1.442695
      %v1121 = vpow.pop %v1120
      %v1122 = vmul.f32 %v1099, 1.442695
      %v1123 = vpow.pop %v1122
      %v1124 = vmul.f32 %v1100, 1.442695
      %v1125 = vpow.pop %v1124
      %v1126 = vmul.f32 %v1101, 1.442695
      %v1127 = vpow.pop %v1126
      %v1128 = vmul.f32 %v1102, 1.442695
      %v1129 = vpow.pop %v1128
      %v1130 = vmul.f32 %v1103, 1.442695
      %v1131 = vpow.pop %v1130
      %v1132 = vmul.f32 %v1104, 1.442695
      %v1133 = vpow.pop %v1132
      %v1134 = vmul.f32 %v1105, 1.442695
      %v1135 = vpow.pop %v1134
      %v1136 = vmul.f32 %v1106, 1.442695
      %v1137 = vpow.pop %v1136
      %v1138 = vmul.f32 %v1107, 1.442695
      %v1139 = vpow.pop %v1138
      %v1140 = vadd.f32 %v1109, 1.0
      %v1141 = vadd.f32 %v1111, 1.0
      %v1142 = vadd.f32 %v1113, 1.0
      %v1143 = vadd.f32 %v1115, 1.0
      %v1144 = vadd.f32 %v1117, 1.0
      %v1145 = vadd.f32 %v1119, 1.0
      %v1146 = vadd.f32 %v1121, 1.0
      %v1147 = vadd.f32 %v1123, 1.0
      %v1148 = vadd.f32 %v1125, 1.0
      %v1149 = vadd.f32 %v1127, 1.0
      %v1150 = vadd.f32 %v1129, 1.0
      %v1151 = vadd.f32 %v1131, 1.0
      %v1152 = vadd.f32 %v1133, 1.0
      %v1153 = vadd.f32 %v1135, 1.0
      %v1154 = vadd.f32 %v1137, 1.0
      %v1155 = vadd.f32 %v1139, 1.0
      %v1156 = vrcp.pop %v1140
      %v1157 = vmul.f32 1.0, %v1156
      %v1158 = vrcp.pop %v1141
      %v1159 = vmul.f32 1.0, %v1158
      %v1160 = vrcp.pop %v1142
      %v1161 = vmul.f32 1.0, %v1160
      %v1162 = vrcp.pop %v1143
      %v1163 = vmul.f32 1.0, %v1162
      %v1164 = vrcp.pop %v1144
      %v1165 = vmul.f32 1.0, %v1164
      %v1166 = vrcp.pop %v1145
      %v1167 = vmul.f32 1.0, %v1166
      %v1168 = vrcp.pop %v1146
      %v1169 = vmul.f32 1.0, %v1168
      %v1170 = vrcp.pop %v1147
      %v1171 = vmul.f32 1.0, %v1170
      %v1172 = vrcp.pop %v1148
      %v1173 = vmul.f32 1.0, %v1172
      %v1174 = vrcp.pop %v1149
      %v1175 = vmul.f32 1.0, %v1174
      %v1176 = vrcp.pop %v1150
      %v1177 = vmul.f32 1.0, %v1176
      %v1178 = vrcp.pop %v1151
      %v1179 = vmul.f32 1.0, %v1178
      %v1180 = vrcp.pop %v1152
      %v1181 = vmul.f32 1.0, %v1180
      %v1182 = vrcp.pop %v1153
      %v1183 = vmul.f32 1.0, %v1182
      %v1184 = vrcp.pop %v1154
      %v1185 = vmul.f32 1.0, %v1184
      %v1186 = vrcp.pop %v1155
      %v1187 = vmul.f32 1.0, %v1186
      %1189 = vset.pattern.permute.xlu0 0
      %1190 = vperm.xlu0 %1189, %v1157
      %v1191 = vpop.permute.xlu0 %1190
      %1194 = vset.pattern.permute.xlu0 0
      %1195 = vperm.xlu0 %1194, %v1159
      %v1196 = vpop.permute.xlu0 %1195
      %1199 = vset.pattern.permute.xlu0 0
      %1200 = vperm.xlu0 %1199, %v1161
      %v1201 = vpop.permute.xlu0 %1200
      %1204 = vset.pattern.permute.xlu0 0
      %1205 = vperm.xlu0 %1204, %v1163
      %v1206 = vpop.permute.xlu0 %1205
      %1209 = vset.pattern.permute.xlu0 0
      %1210 = vperm.xlu0 %1209, %v1165
      %v1211 = vpop.permute.xlu0 %1210
      %1214 = vset.pattern.permute.xlu0 0
      %1215 = vperm.xlu0 %1214, %v1167
      %v1216 = vpop.permute.xlu0 %1215
      %1219 = vset.pattern.permute.xlu0 0
      %1220 = vperm.xlu0 %1219, %v1169
      %v1221 = vpop.permute.xlu0 %1220
      %1224 = vset.pattern.permute.xlu0 0
      %1225 = vperm.xlu0 %1224, %v1171
      %v1226 = vpop.permute.xlu0 %1225
      %1229 = vset.pattern.permute.xlu0 0
      %1230 = vperm.xlu0 %1229, %v1173
      %v1231 = vpop.permute.xlu0 %1230
      %1234 = vset.pattern.permute.xlu0 0
      %1235 = vperm.xlu0 %1234, %v1175
      %v1236 = vpop.permute.xlu0 %1235
      %1239 = vset.pattern.permute.xlu0 0
      %1240 = vperm.xlu0 %1239, %v1177
      %v1241 = vpop.permute.xlu0 %1240
      %1244 = vset.pattern.permute.xlu0 0
      %1245 = vperm.xlu0 %1244, %v1179
      %v1246 = vpop.permute.xlu0 %1245
      %1249 = vset.pattern.permute.xlu0 0
      %1250 = vperm.xlu0 %1249, %v1181
      %v1251 = vpop.permute.xlu0 %1250
      %1254 = vset.pattern.permute.xlu0 0
      %1255 = vperm.xlu0 %1254, %v1183
      %v1256 = vpop.permute.xlu0 %1255
      %1259 = vset.pattern.permute.xlu0 0
      %1260 = vperm.xlu0 %1259, %v1185
      %v1261 = vpop.permute.xlu0 %1260
      %1264 = vset.pattern.permute.xlu0 0
      %1265 = vperm.xlu0 %1264, %v1187
      %v1266 = vpop.permute.xlu0 %1265
      %v1268 = vmul.f32 %v225, %v1191
      %v1269 = vmul.f32 %v226, %v1191
      %v1270 = vmul.f32 %v227, %v1196
      %v1271 = vmul.f32 %v228, %v1196
      %v1272 = vmul.f32 %v229, %v1201
      %v1273 = vmul.f32 %v230, %v1201
      %v1274 = vmul.f32 %v231, %v1206
      %v1275 = vmul.f32 %v232, %v1206
      %v1276 = vmul.f32 %v233, %v1211
      %v1277 = vmul.f32 %v234, %v1211
      %v1278 = vmul.f32 %v235, %v1216
      %v1279 = vmul.f32 %v236, %v1216
      %v1280 = vmul.f32 %v237, %v1221
      %v1281 = vmul.f32 %v238, %v1221
      %v1282 = vmul.f32 %v239, %v1226
      %v1283 = vmul.f32 %v240, %v1226
      %v1284 = vmul.f32 %v241, %v1231
      %v1285 = vmul.f32 %v242, %v1231
      %v1286 = vmul.f32 %v243, %v1236
      %v1287 = vmul.f32 %v244, %v1236
      %v1288 = vmul.f32 %v245, %v1241
      %v1289 = vmul.f32 %v246, %v1241
      %v1290 = vmul.f32 %v247, %v1246
      %v1291 = vmul.f32 %v248, %v1246
      %v1292 = vmul.f32 %v249, %v1251
      %v1293 = vmul.f32 %v250, %v1251
      %v1294 = vmul.f32 %v251, %v1256
      %v1295 = vmul.f32 %v252, %v1256
      %v1296 = vmul.f32 %v253, %v1261
      %v1297 = vmul.f32 %v254, %v1261
      %v1298 = vmul.f32 %v255, %v1266
      %v1299 = vmul.f32 %v256, %v1266
      %1300 = vst [vmem:[%s224] sm:$0xff] %v1268
      %1301 = vst [vmem:[%s224 + $0x8] sm:$0xff] %v1269
      %1302 = vst [vmem:[%s224 + $0x10] sm:$0xff] %v1270
      %1303 = vst [vmem:[%s224 + $0x18] sm:$0xff] %v1271
      %1304 = vst [vmem:[%s224 + $0x20] sm:$0xff] %v1272
      %1305 = vst [vmem:[%s224 + $0x28] sm:$0xff] %v1273
      %1306 = vst [vmem:[%s224 + $0x30] sm:$0xff] %v1274
      %1307 = vst [vmem:[%s224 + $0x38] sm:$0xff] %v1275
      %1308 = vst [vmem:[%s224 + $0x40] sm:$0xff] %v1276
      %1309 = vst [vmem:[%s224 + $0x48] sm:$0xff] %v1277
      %1310 = vst [vmem:[%s224 + $0x50] sm:$0xff] %v1278
      %1311 = vst [vmem:[%s224 + $0x58] sm:$0xff] %v1279
      %1312 = vst [vmem:[%s224 + $0x60] sm:$0xff] %v1280
      %1313 = vst [vmem:[%s224 + $0x68] sm:$0xff] %v1281
      %1314 = vst [vmem:[%s224 + $0x70] sm:$0xff] %v1282
      %1315 = vst [vmem:[%s224 + $0x78] sm:$0xff] %v1283
      %1316 = vst [vmem:[%s224 + $0x80] sm:$0xff] %v1284
      %1317 = vst [vmem:[%s224 + $0x88] sm:$0xff] %v1285
      %1318 = vst [vmem:[%s224 + $0x90] sm:$0xff] %v1286
      %1319 = vst [vmem:[%s224 + $0x98] sm:$0xff] %v1287
      %1320 = vst [vmem:[%s224 + $0xa0] sm:$0xff] %v1288
      %1321 = vst [vmem:[%s224 + $0xa8] sm:$0xff] %v1289
      %1322 = vst [vmem:[%s224 + $0xb0] sm:$0xff] %v1290
      %1323 = vst [vmem:[%s224 + $0xb8] sm:$0xff] %v1291
      %1324 = vst [vmem:[%s224 + $0xc0] sm:$0xff] %v1292
      %1325 = vst [vmem:[%s224 + $0xc8] sm:$0xff] %v1293
      %1326 = vst [vmem:[%s224 + $0xd0] sm:$0xff] %v1294
      %1327 = vst [vmem:[%s224 + $0xd8] sm:$0xff] %v1295
      %1328 = vst [vmem:[%s224 + $0xe0] sm:$0xff] %v1296
      %1329 = vst [vmem:[%s224 + $0xe8] sm:$0xff] %v1297
      %1330 = vst [vmem:[%s224 + $0xf0] sm:$0xff] %v1298
      %1331 = vst [vmem:[%s224 + $0xf8] sm:$0xff] %v1299
      %p1332 = scmp.lt.s32.totalorder %s16, 1
      %s1333 = scalar_select %p1332, %s16, 1
      %s1334 = smul.addr %s1333, 32
      %s1335 = smul.addr %s1334, 8
      %s1336 = scalar_lea.vmem %s5, %s1335
      // Predicated region
      $region41: #{channel_attention.1} parent=39 // pred_check
        %p1337 = pneg %p144
      $region42: #{channel_attention.1} parent=39 // pred_check_branch
        %1339 = sbr.rel (%p1337) target = $region44
      $region43: #{channel_attention.1} parent=39 // pred_region
        _
      $region44: #{channel_attention.1} parent=39 // pred_fallthru
        _
    $region40: #{channel_attention.1} parent=5 // pred_fallthru
      _
    %p1340 = scmp.le.s32.totalorder 2, %s11
    // Predicated region
    $region45: #{channel_attention.1} parent=5 // pred_check
      %p1341 = pneg %p1340
    $region46: #{channel_attention.1} parent=5 // pred_check_branch
      %1343 = sbr.rel (%p1341) target = $region48
    $region47: #{channel_attention.1} parent=5 // pred_region
      %s1344 = ssub.s32 %s11, 2
      // Predicated region
      $region49: #{channel_attention.1} parent=47 // pred_check
        %p1345 = pneg %p150
      $region50: #{channel_attention.1} parent=47 // pred_check_branch
        %1347 = sbr.rel (%p1345) target = $region52
      $region51: #{channel_attention.1} parent=47 // pred_region
        %p1348 = scmp.lt.s32.totalorder %s17, 1
        %s1349 = scalar_select %p1348, %s17, 1
        %s1350 = smul.addr %s1349, 32
        %s1351 = smul.addr %s1350, 8
        %s1352 = scalar_lea.vmem %s5, %s1351
      $region52: #{channel_attention.1} parent=47 // pred_fallthru
        _
    $region48: #{channel_attention.1} parent=5 // pred_fallthru
      _
  $region6: #{channel_attention.1} parent=0 // loop_footer
    %s15 = sadd.s32 1, %s11
  $region7: #{channel_attention.1} parent=0 // loop_footer_branch
    %10 = sbr.rel target = $region3
  $region8: #{channel_attention.1} parent=0 // loop_exit
    _

</llo_original>
